<compile_context>
chip_gen: v5e
topology: v5e:2x2
jax: 0.10.0
libtpu: 0.0.40
codegen_flags: <defaults>
</compile_context>

<pallas_src>
import functools

import jax
import jax.numpy as jnp
from jax import lax
from jax.experimental import pallas as pl
from jax.experimental.pallas import tpu as pltpu


# ----------------------------- Pallas kernel ------------------------------- #

def _fused_block_kernel(x_ref, wi_ref, bi_ref, wm_ref, bm_ref, bo_ref, h_ref,
                        *, kernel_size, dilations, L):
    """All cells of a DilatedBlock for one lane-folded batch tile.

    x_ref  : (1, C_in,  bt*L)      lane-folded input slab (batch in lanes)
    wi_ref : (N*K, C_out, C_in)    per-tap in_conv weights (row n*K + t)
    bi_ref : (N, C_out, 1)         in_conv bias
    wm_ref : (N*K, C_out, C_out)   per-tap mid_conv weights
    bm_ref : (N, C_out, 1)         mid_conv bias
    bo_ref : (1, C_out, bt*L)      block_o = sum_i o_i
    h_ref  : (1, C_out, bt*L)      carried h of the last cell
    """
    K = kernel_size
    C_out = bo_ref.shape[1]
    total = x_ref.shape[2]                      # bt * L folded lane width
    mm_dtype = wi_ref.dtype                     # MXU operand dtype (f32/bf16)

    # Lane position within each folded batch segment, hoisted once (JAX does
    # not CSE broadcast/iota); per-offset edge masks hoisted with it.  Masks
    # are stored in the matmul dtype so the masked operands feed the MXU
    # without an extra cast.
    lane_pos = jax.lax.broadcasted_iota(jnp.int32, (1, total), 1) % L

    pad_mid = (K - 1) // 2
    offs = set()
    for d in dilations:
        pad_in = (K - 1) * d // 2
        offs.update(t * d - pad_in for t in range(K))
        offs.update(t - pad_mid for t in range(K))
    masks = {}
    for off in sorted(offs):
        if off > 0:
            masks[off] = (lane_pos < (L - off)).astype(mm_dtype)
        elif off < 0:
            masks[off] = (lane_pos >= (-off)).astype(mm_dtype)

    def shifted(v, off):
        # out[:, b*L + l] = v[:, b*L + l + off], zeroed where l + off falls
        # outside [0, L): this implements the conv zero-padding and also
        # kills the cyclic wraparound / cross-segment bleed of the rotate.
        if off == 0:
            return v
        r = pltpu.roll(v, (-off) % total, axis=1)   # XLU lane rotate
        return r * masks[off]

    def conv(v, w_ref, b_ref, n, dil, pad):
        # K tap matmuls on the MXU; f32 accumulation across taps.
        acc = None
        for t in range(K):
            c = jnp.dot(w_ref[n * K + t], shifted(v, t * dil - pad),
                        preferred_element_type=jnp.float32)
            acc = c if acc is None else acc + c
        return acc + b_ref[n]                       # (C_out, 1) lane broadcast

    cur = x_ref[0].astype(jnp.float32)              # carried h, (C, bt*L)
    block_o = jnp.zeros((C_out, total), jnp.float32)

    # NOTE: at very large C_out the per-cell live set (cur/block_o/a/z) should
    # additionally be chunked over lane sub-slices to bound vreg pressure; at
    # the lane cap of 1024 and moderate C it fits comfortably.
    for n, d in enumerate(dilations):               # static loop over cells
        a = conv(cur.astype(mm_dtype), wi_ref, bi_ref, n, d, (K - 1) * d // 2)
        z = jnp.tanh(a) * jax.nn.sigmoid(a)         # gating in f32 (EUP/VPU)
        m = conv(z.astype(mm_dtype), wm_ref, bm_ref, n, 1, pad_mid)
        o = jnp.tanh(m)
        block_o = block_o + o                       # block accumulator
        cur = o + cur                               # h = o + residual

    bo_ref[0] = block_o.astype(bo_ref.dtype)
    h_ref[0] = cur.astype(h_ref.dtype)


# ------------------------------- wrappers ----------------------------------- #

def _pick_batch_tile(B, L, max_lanes=1024):
    """Pick the batch fold bt (a divisor of B).

    Preference: folded lane width bt*L that is a multiple of 128 (unmasked
    full-vreg stores) > leaving T = B // bt >= 2 grid steps (so the
    "parallel" axis can shard across v7x's two TensorCores) > wider lanes.
    bt*L is capped at max_lanes (bt == 1 is always allowed, whatever L is).
    """
    best_bt, best_key = 1, None
    for bt in range(1, B + 1):
        if B % bt:
            continue
        lanes = bt * L
        if bt > 1 and lanes > max_lanes:
            continue
        key = (lanes % 128 == 0, B // bt >= 2, lanes)
        if best_key is None or key > best_key:
            best_bt, best_key = bt, key
    return best_bt


def dilated_block(x, cell_params, kernel_size, dilation_list, *,
                  matmul_dtype=jnp.float32, return_h=False):
    """Fused DilatedBlock forward: block_o = sum_i o_i, x carried as h_i.

    Each cell matches DilatedCell.forward exactly:
        a = in_conv(x); z = tanh(a)*sigmoid(a); o = tanh(mid_conv(z)); h = o + x
    Returns block_o (and the final carried h if return_h=True).
    """
    B, C_in, L = x.shape
    K = kernel_size
    N = len(dilation_list)
    C_out = cell_params[0][0].shape[0]
    assert C_in == C_out, "residual h = o + x requires in_channels == out_channels"
    assert K % 2 == 1, "mid_conv keeps the length only for odd kernel_size"
    for (w_in, _, w_mid, _), d in zip(cell_params, dilation_list):
        assert w_in.shape == (C_out, C_in, K)
        assert w_mid.shape == (C_out, C_out, K)
        assert (K - 1) * d % 2 == 0, "odd (K-1)*dilation changes the output length"

    # Per-tap weight stacks: row n*K + t is tap t of cell n, i.e. the
    # (C_out, C_in) matrix multiplying x[:, l + t*d - pad].
    wi = jnp.concatenate([jnp.transpose(p[0], (2, 0, 1)) for p in cell_params],
                         axis=0).astype(matmul_dtype)
    wm = jnp.concatenate([jnp.transpose(p[2], (2, 0, 1)) for p in cell_params],
                         axis=0).astype(matmul_dtype)
    bi = jnp.stack([p[1].reshape(C_out, 1)
                    for p in cell_params]).astype(jnp.float32)
    bm = jnp.stack([p[3].reshape(C_out, 1)
                    for p in cell_params]).astype(jnp.float32)

    # Fold batch into lanes only when L alone under-fills them:
    # (B, C, L) -> (T, C, bt*L) lane-dense slabs.  No transpose pass if bt==1.
    bt = _pick_batch_tile(B, L)
    T = B // bt
    xf = x.astype(jnp.float32)
    if bt == 1:
        x_slab = xf
    else:
        x_slab = jnp.transpose(xf.reshape(T, bt, C_in, L),
                               (0, 2, 1, 3)).reshape(T, C_in, bt * L)

    kern = functools.partial(
        _fused_block_kernel, kernel_size=K,
        dilations=tuple(int(d) for d in dilation_list), L=L)

    tile3 = lambda i: (i, 0, 0)
    full3 = lambda i: (0, 0, 0)

    bo_slab, h_slab = pl.pallas_call(
        kern,
        grid=(T,),
        in_specs=[
            pl.BlockSpec((1, C_in, bt * L), tile3),
            pl.BlockSpec((N * K, C_out, C_in), full3),
            pl.BlockSpec((N, C_out, 1), full3),
            pl.BlockSpec((N * K, C_out, C_out), full3),
            pl.BlockSpec((N, C_out, 1), full3),
        ],
        out_specs=[
            pl.BlockSpec((1, C_out, bt * L), tile3),
            pl.BlockSpec((1, C_out, bt * L), tile3),
        ],
        out_shape=(
            jax.ShapeDtypeStruct((T, C_out, bt * L), jnp.float32),
            jax.ShapeDtypeStruct((T, C_out, bt * L), jnp.float32),
        ),
        compiler_params=pltpu.CompilerParams(
            dimension_semantics=("parallel",),
            vmem_limit_bytes=48 * 1024 * 1024),
    )(x_slab, wi, bi, wm, bm)

    if bt == 1:
        unfold = lambda s: s
    else:
        unfold = lambda s: jnp.transpose(
            s.reshape(T, C_out, bt, L), (0, 2, 1, 3)).reshape(B, C_out, L)

    block_o = unfold(bo_slab)
    if return_h:
        return block_o, unfold(h_slab)
    return block_o


def dilated_cell(x, params, kernel_size, dilation, *, matmul_dtype=jnp.float32):
    """DilatedCell.forward: returns (o, h).  A single-cell block has
    block_o == o and carried h == o + x, so it reuses the fused kernel."""
    o, h = dilated_block(x, [params], kernel_size, [dilation],
                         matmul_dtype=matmul_dtype, return_h=True)
    return o, h


# --------------------------- parameter creation ----------------------------- #

def init_params(key, in_channels, out_channels, kernel_size, dilation_list):
    params = []
    c_in = in_channels
    for _ in dilation_list:
        key, k1, k2, k3, k4 = jax.random.split(key, 5)
        w_in = 0.1 * jax.random.normal(k1, (out_channels, c_in, kernel_size),
                                       jnp.float32)
        b_in = 0.1 * jax.random.normal(k2, (out_channels,), jnp.float32)
        w_mid = 0.1 * jax.random.normal(k3, (out_channels, out_channels,
                                             kernel_size), jnp.float32)
        b_mid = 0.1 * jax.random.normal(k4, (out_channels,), jnp.float32)
        params.append((w_in, b_in, w_mid, b_mid))
        c_in = out_channels
    return params


# ------------------------------ JAX reference ------------------------------- #

def _conv1d_ref(x, w, b, dilation, padding):
    y = lax.conv_general_dilated(
        x, w, window_strides=(1,), padding=[(padding, padding)],
        rhs_dilation=(dilation,), dimension_numbers=('NCH', 'OIH', 'NCH'),
        precision=lax.Precision.HIGHEST)
    return y + b[None, :, None]


def dilated_cell_ref(x, params, kernel_size, dilation):
    w_in, b_in, w_mid, b_mid = params
    res = x
    a = _conv1d_ref(x, w_in, b_in, dilation, (kernel_size - 1) * dilation // 2)
    z = jnp.tanh(a) * jax.nn.sigmoid(a)
    o = jnp.tanh(_conv1d_ref(z, w_mid, b_mid, 1, (kernel_size - 1) // 2))
    return o, o + res


def dilated_block_ref(x, cell_params, kernel_size, dilation_list):
    block_o = jnp.zeros_like(x)
    for params, d in zip(cell_params, dilation_list):
        o, x = dilated_cell_ref(x, params, kernel_size, d)
        block_o = block_o + o
    return block_o, x


# ---------------------------------- main ------------------------------------ #

if __name__ == "__main__":
    # Small config consistent with the module.  B=4, L=64 makes the picker
    # fold bt=2 batches into 128 lanes (lane-dense, unmasked stores) while
    # keeping T=2 grid steps for the "parallel" axis.
    B, C, L = 4, 8, 64
    kernel_size = 3
    dilation_list = [1, 2, 4]

    key = jax.random.PRNGKey(0)
    key, kx = jax.random.split(key)
    x = jax.random.normal(kx, (B, C, L), jnp.float32)
    params = init_params(key, C, C, kernel_size, dilation_list)

    # --- single DilatedCell (the module's forward): (o, h) ------------------
    o, h = dilated_cell(x, params[0], kernel_size, dilation_list[0])
    jax.block_until_ready((o, h))
    o_r, h_r = dilated_cell_ref(x, params[0], kernel_size, dilation_list[0])
    assert o.shape == (B, C, L) and h.shape == (B, C, L)
    assert jnp.allclose(o, o_r, rtol=1e-3, atol=1e-3), (
        f"o max abs err {jnp.max(jnp.abs(o - o_r))}")
    assert jnp.allclose(h, h_r, rtol=1e-3, atol=1e-3), (
        f"h max abs err {jnp.max(jnp.abs(h - h_r))}")

    # --- fused DilatedBlock (stack of cells, one pallas_call) ---------------
    block_o, h_last = dilated_block(x, params, kernel_size, dilation_list,
                                    return_h=True)
    jax.block_until_ready((block_o, h_last))
    bo_r, h_last_r = dilated_block_ref(x, params, kernel_size, dilation_list)
    assert block_o.shape == (B, C, L)
    assert jnp.allclose(block_o, bo_r, rtol=1e-3, atol=1e-3), (
        f"block_o max abs err {jnp.max(jnp.abs(block_o - bo_r))}")
    assert jnp.allclose(h_last, h_last_r, rtol=1e-3, atol=1e-3), (
        f"h_last max abs err {jnp.max(jnp.abs(h_last - h_last_r))}")

    print("KERNEL_OK")
</pallas_src>

<mosaic_0001>
module attributes {stable_mosaic.version = 11 : i64} {
  func.func @_fused_block_kernel(%arg0: i32, %arg1: memref<1x8x128xf32, #tpu.memory_space<vmem>>, %arg2: memref<3x8x8xf32, #tpu.memory_space<vmem>>, %arg3: memref<1x8x1xf32, #tpu.memory_space<vmem>>, %arg4: memref<3x8x8xf32, #tpu.memory_space<vmem>>, %arg5: memref<1x8x1xf32, #tpu.memory_space<vmem>>, %arg6: memref<1x8x128xf32, #tpu.memory_space<vmem>>, %arg7: memref<1x8x128xf32, #tpu.memory_space<vmem>>) attributes {dimension_semantics = [#tpu.dimension_semantics<parallel>], iteration_bounds = array<i64: 2>, scalar_prefetch = 0 : i64, scratch_operands = 0 : i64, tpu.core_type = #tpu.core_type<tc>, window_params = [{transform_indices = @transform_0, window_bounds = array<i64: 1, 8, 128>}, {pipeline_mode = #tpu.pipeline_mode<synchronous>, transform_indices = @transform_1, window_bounds = array<i64: 3, 8, 8>}, {pipeline_mode = #tpu.pipeline_mode<synchronous>, transform_indices = @transform_2, window_bounds = array<i64: 1, 8, 1>}, {pipeline_mode = #tpu.pipeline_mode<synchronous>, transform_indices = @transform_3, window_bounds = array<i64: 3, 8, 8>}, {pipeline_mode = #tpu.pipeline_mode<synchronous>, transform_indices = @transform_4, window_bounds = array<i64: 1, 8, 1>}, {transform_indices = @transform_5, window_bounds = array<i64: 1, 8, 128>}, {transform_indices = @transform_6, window_bounds = array<i64: 1, 8, 128>}]} {
    %0 = tpu.iota {dimensions = array<i32: 1>} : vector<1x128xi32>
    %c64_i32 = arith.constant 64 : i32
    %c0_i32 = arith.constant 0 : i32
    %1 = arith.cmpi eq, %c64_i32, %c0_i32 : i32
    %c1_i32 = arith.constant 1 : i32
    %2 = arith.select %1, %c1_i32, %c64_i32 : i32
    %3 = vector.broadcast %2 : i32 to vector<1x128xi32>
    %4 = arith.remsi %0, %3 : vector<1x128xi32>
    %c0_i32_0 = arith.constant 0 : i32
    %5 = vector.broadcast %c0_i32_0 : i32 to vector<1x128xi32>
    %6 = arith.cmpi ne, %4, %5 : vector<1x128xi32>
    %c0_i32_1 = arith.constant 0 : i32
    %7 = vector.broadcast %c0_i32_1 : i32 to vector<1x128xi32>
    %8 = arith.cmpi slt, %4, %7 : vector<1x128xi32>
    %c0_i32_2 = arith.constant 0 : i32
    %9 = arith.cmpi slt, %2, %c0_i32_2 : i32
    %10 = vector.broadcast %9 : i1 to vector<1x128xi1>
    %11 = vector.broadcast %10 : vector<1x128xi1> to vector<1x128xi1>
    %12 = arith.xori %8, %11 : vector<1x128xi1>
    %13 = arith.andi %12, %6 : vector<1x128xi1>
    %14 = vector.broadcast %2 : i32 to vector<1x128xi32>
    %15 = arith.addi %4, %14 : vector<1x128xi32>
    %16 = arith.select %13, %15, %4 : vector<1x128xi1>, vector<1x128xi32>
    %c1_i32_3 = arith.constant 1 : i32
    %17 = vector.broadcast %c1_i32_3 : i32 to vector<1x128xi32>
    %18 = arith.cmpi sge, %16, %17 : vector<1x128xi32>
    %19 = arith.extui %18 : vector<1x128xi1> to vector<1x128xi32>
    %20 = arith.sitofp %19 : vector<1x128xi32> to vector<1x128xf32>
    %c63_i32 = arith.constant 63 : i32
    %21 = vector.broadcast %c63_i32 : i32 to vector<1x128xi32>
    %22 = arith.cmpi slt, %16, %21 : vector<1x128xi32>
    %23 = arith.extui %22 : vector<1x128xi1> to vector<1x128xi32>
    %24 = arith.sitofp %23 : vector<1x128xi32> to vector<1x128xf32>
    %c0 = arith.constant 0 : index
    %c0_4 = arith.constant 0 : index
    %c0_5 = arith.constant 0 : index
    %25 = vector.load %arg1[%c0, %c0_4, %c0_5] : memref<1x8x128xf32, #tpu.memory_space<vmem>>, vector<1x8x128xf32>
    %26 = vector.shape_cast %25 : vector<1x8x128xf32> to vector<8x128xf32>
    %cst = arith.constant 0.000000e+00 : f32
    %27 = vector.broadcast %cst : f32 to vector<8x128xf32>
    %c0_6 = arith.constant 0 : index
    %c0_7 = arith.constant 0 : index
    %c0_8 = arith.constant 0 : index
    %28 = vector.load %arg2[%c0_6, %c0_7, %c0_8] : memref<3x8x8xf32, #tpu.memory_space<vmem>>, vector<1x8x8xf32>
    %29 = vector.shape_cast %28 : vector<1x8x8xf32> to vector<8x8xf32>
    %c1_i32_9 = arith.constant 1 : i32
    %30 = tpu.dynamic_rotate %26 by %c1_i32_9 dim 1 : vector<8x128xf32>, i32 -> vector<8x128xf32>
    %31 = vector.broadcast %20 : vector<1x128xf32> to vector<8x128xf32>
    %32 = arith.mulf %30, %31 : vector<8x128xf32>
    %cst_10 = arith.constant dense<0.000000e+00> : vector<8x128xf32>
    %33 = tpu.matmul %29, %32, %cst_10 {dimension_numbers = #tpu.dot_dimension_numbers<[1], [0], [0], [1], [0, 0, 1, 1], [], []>} : vector<8x8xf32>, vector<8x128xf32>, vector<8x128xf32> -> vector<8x128xf32>
    %c1 = arith.constant 1 : index
    %c0_11 = arith.constant 0 : index
    %c0_12 = arith.constant 0 : index
    %34 = vector.load %arg2[%c1, %c0_11, %c0_12] : memref<3x8x8xf32, #tpu.memory_space<vmem>>, vector<1x8x8xf32>
    %35 = vector.shape_cast %34 : vector<1x8x8xf32> to vector<8x8xf32>
    %cst_13 = arith.constant dense<0.000000e+00> : vector<8x128xf32>
    %36 = tpu.matmul %35, %26, %cst_13 {dimension_numbers = #tpu.dot_dimension_numbers<[1], [0], [0], [1], [0, 0, 1, 1], [], []>} : vector<8x8xf32>, vector<8x128xf32>, vector<8x128xf32> -> vector<8x128xf32>
    %37 = arith.addf %33, %36 : vector<8x128xf32>
    %c2 = arith.constant 2 : index
    %c0_14 = arith.constant 0 : index
    %c0_15 = arith.constant 0 : index
    %38 = vector.load %arg2[%c2, %c0_14, %c0_15] : memref<3x8x8xf32, #tpu.memory_space<vmem>>, vector<1x8x8xf32>
    %39 = vector.shape_cast %38 : vector<1x8x8xf32> to vector<8x8xf32>
    %c127_i32 = arith.constant 127 : i32
    %40 = tpu.dynamic_rotate %26 by %c127_i32 dim 1 : vector<8x128xf32>, i32 -> vector<8x128xf32>
    %41 = vector.broadcast %24 : vector<1x128xf32> to vector<8x128xf32>
    %42 = arith.mulf %40, %41 : vector<8x128xf32>
    %cst_16 = arith.constant dense<0.000000e+00> : vector<8x128xf32>
    %43 = tpu.matmul %39, %42, %cst_16 {dimension_numbers = #tpu.dot_dimension_numbers<[1], [0], [0], [1], [0, 0, 1, 1], [], []>} : vector<8x8xf32>, vector<8x128xf32>, vector<8x128xf32> -> vector<8x128xf32>
    %44 = arith.addf %37, %43 : vector<8x128xf32>
    %c0_17 = arith.constant 0 : index
    %c0_18 = arith.constant 0 : index
    %c0_19 = arith.constant 0 : index
    %45 = vector.load %arg3[%c0_17, %c0_18, %c0_19] : memref<1x8x1xf32, #tpu.memory_space<vmem>>, vector<1x8x1xf32>
    %46 = vector.shape_cast %45 : vector<1x8x1xf32> to vector<8x1xf32>
    %47 = vector.broadcast %46 : vector<8x1xf32> to vector<8x128xf32>
    %48 = arith.addf %44, %47 : vector<8x128xf32>
    %49 = math.tanh %48 : vector<8x128xf32>
    %50 = arith.negf %48 : vector<8x128xf32>
    %51 = math.exp %50 : vector<8x128xf32>
    %cst_20 = arith.constant 1.000000e+00 : f32
    %52 = vector.broadcast %cst_20 : f32 to vector<8x128xf32>
    %53 = arith.addf %52, %51 : vector<8x128xf32>
    %54 = arith.divf %52, %53 : vector<8x128xf32>
    %55 = arith.mulf %49, %54 : vector<8x128xf32>
    %c0_21 = arith.constant 0 : index
    %c0_22 = arith.constant 0 : index
    %c0_23 = arith.constant 0 : index
    %56 = vector.load %arg4[%c0_21, %c0_22, %c0_23] : memref<3x8x8xf32, #tpu.memory_space<vmem>>, vector<1x8x8xf32>
    %57 = vector.shape_cast %56 : vector<1x8x8xf32> to vector<8x8xf32>
    %c1_i32_24 = arith.constant 1 : i32
    %58 = tpu.dynamic_rotate %55 by %c1_i32_24 dim 1 : vector<8x128xf32>, i32 -> vector<8x128xf32>
    %59 = vector.broadcast %20 : vector<1x128xf32> to vector<8x128xf32>
    %60 = arith.mulf %58, %59 : vector<8x128xf32>
    %cst_25 = arith.constant dense<0.000000e+00> : vector<8x128xf32>
    %61 = tpu.matmul %57, %60, %cst_25 {dimension_numbers = #tpu.dot_dimension_numbers<[1], [0], [0], [1], [0, 0, 1, 1], [], []>} : vector<8x8xf32>, vector<8x128xf32>, vector<8x128xf32> -> vector<8x128xf32>
    %c1_26 = arith.constant 1 : index
    %c0_27 = arith.constant 0 : index
    %c0_28 = arith.constant 0 : index
    %62 = vector.load %arg4[%c1_26, %c0_27, %c0_28] : memref<3x8x8xf32, #tpu.memory_space<vmem>>, vector<1x8x8xf32>
    %63 = vector.shape_cast %62 : vector<1x8x8xf32> to vector<8x8xf32>
    %cst_29 = arith.constant dense<0.000000e+00> : vector<8x128xf32>
    %64 = tpu.matmul %63, %55, %cst_29 {dimension_numbers = #tpu.dot_dimension_numbers<[1], [0], [0], [1], [0, 0, 1, 1], [], []>} : vector<8x8xf32>, vector<8x128xf32>, vector<8x128xf32> -> vector<8x128xf32>
    %65 = arith.addf %61, %64 : vector<8x128xf32>
    %c2_30 = arith.constant 2 : index
    %c0_31 = arith.constant 0 : index
    %c0_32 = arith.constant 0 : index
    %66 = vector.load %arg4[%c2_30, %c0_31, %c0_32] : memref<3x8x8xf32, #tpu.memory_space<vmem>>, vector<1x8x8xf32>
    %67 = vector.shape_cast %66 : vector<1x8x8xf32> to vector<8x8xf32>
    %c127_i32_33 = arith.constant 127 : i32
    %68 = tpu.dynamic_rotate %55 by %c127_i32_33 dim 1 : vector<8x128xf32>, i32 -> vector<8x128xf32>
    %69 = vector.broadcast %24 : vector<1x128xf32> to vector<8x128xf32>
    %70 = arith.mulf %68, %69 : vector<8x128xf32>
    %cst_34 = arith.constant dense<0.000000e+00> : vector<8x128xf32>
    %71 = tpu.matmul %67, %70, %cst_34 {dimension_numbers = #tpu.dot_dimension_numbers<[1], [0], [0], [1], [0, 0, 1, 1], [], []>} : vector<8x8xf32>, vector<8x128xf32>, vector<8x128xf32> -> vector<8x128xf32>
    %72 = arith.addf %65, %71 : vector<8x128xf32>
    %c0_35 = arith.constant 0 : index
    %c0_36 = arith.constant 0 : index
    %c0_37 = arith.constant 0 : index
    %73 = vector.load %arg5[%c0_35, %c0_36, %c0_37] : memref<1x8x1xf32, #tpu.memory_space<vmem>>, vector<1x8x1xf32>
    %74 = vector.shape_cast %73 : vector<1x8x1xf32> to vector<8x1xf32>
    %75 = vector.broadcast %74 : vector<8x1xf32> to vector<8x128xf32>
    %76 = arith.addf %72, %75 : vector<8x128xf32>
    %77 = math.tanh %76 : vector<8x128xf32>
    %78 = arith.addf %27, %77 : vector<8x128xf32>
    %79 = arith.addf %77, %26 : vector<8x128xf32>
    %c0_38 = arith.constant 0 : index
    %c0_39 = arith.constant 0 : index
    %c0_40 = arith.constant 0 : index
    %80 = vector.load %arg6[%c0_38, %c0_39, %c0_40] : memref<1x8x128xf32, #tpu.memory_space<vmem>>, vector<1x8x128xf32>
    %81 = vector.shape_cast %80 : vector<1x8x128xf32> to vector<8x128xf32>
    %82 = vector.shape_cast %78 : vector<8x128xf32> to vector<1x8x128xf32>
    tpu.vector_store %arg6[%c0_38, %c0_39, %c0_40], %82 {strides = array<i32>} : memref<1x8x128xf32, #tpu.memory_space<vmem>>, vector<1x8x128xf32>,
    %c0_41 = arith.constant 0 : index
    %c0_42 = arith.constant 0 : index
    %c0_43 = arith.constant 0 : index
    %83 = vector.load %arg7[%c0_41, %c0_42, %c0_43] : memref<1x8x128xf32, #tpu.memory_space<vmem>>, vector<1x8x128xf32>
    %84 = vector.shape_cast %83 : vector<1x8x128xf32> to vector<8x128xf32>
    %85 = vector.shape_cast %79 : vector<8x128xf32> to vector<1x8x128xf32>
    tpu.vector_store %arg7[%c0_41, %c0_42, %c0_43], %85 {strides = array<i32>} : memref<1x8x128xf32, #tpu.memory_space<vmem>>, vector<1x8x128xf32>,
    return
  }
  func.func @transform_0(%arg0: i32) -> (i32, i32, i32) {
    %c0_i32 = arith.constant 0 : i32
    %c0_i32_0 = arith.constant 0 : i32
    %c0_i32_1 = arith.constant 0 : i32
    return %arg0, %c0_i32, %c0_i32_0 : i32, i32, i32
  }
  func.func @transform_1(%arg0: i32) -> (i32, i32, i32) {
    %c0_i32 = arith.constant 0 : i32
    %c0_i32_0 = arith.constant 0 : i32
    %c0_i32_1 = arith.constant 0 : i32
    %c0_i32_2 = arith.constant 0 : i32
    return %c0_i32, %c0_i32_0, %c0_i32_1 : i32, i32, i32
  }
  func.func @transform_2(%arg0: i32) -> (i32, i32, i32) {
    %c0_i32 = arith.constant 0 : i32
    %c0_i32_0 = arith.constant 0 : i32
    %c0_i32_1 = arith.constant 0 : i32
    %c0_i32_2 = arith.constant 0 : i32
    return %c0_i32, %c0_i32_0, %c0_i32_1 : i32, i32, i32
  }
  func.func @transform_3(%arg0: i32) -> (i32, i32, i32) {
    %c0_i32 = arith.constant 0 : i32
    %c0_i32_0 = arith.constant 0 : i32
    %c0_i32_1 = arith.constant 0 : i32
    %c0_i32_2 = arith.constant 0 : i32
    return %c0_i32, %c0_i32_0, %c0_i32_1 : i32, i32, i32
  }
  func.func @transform_4(%arg0: i32) -> (i32, i32, i32) {
    %c0_i32 = arith.constant 0 : i32
    %c0_i32_0 = arith.constant 0 : i32
    %c0_i32_1 = arith.constant 0 : i32
    %c0_i32_2 = arith.constant 0 : i32
    return %c0_i32, %c0_i32_0, %c0_i32_1 : i32, i32, i32
  }
  func.func @transform_5(%arg0: i32) -> (i32, i32, i32) {
    %c0_i32 = arith.constant 0 : i32
    %c0_i32_0 = arith.constant 0 : i32
    %c0_i32_1 = arith.constant 0 : i32
    return %arg0, %c0_i32, %c0_i32_0 : i32, i32, i32
  }
  func.func @transform_6(%arg0: i32) -> (i32, i32, i32) {
    %c0_i32 = arith.constant 0 : i32
    %c0_i32_0 = arith.constant 0 : i32
    %c0_i32_1 = arith.constant 0 : i32
    return %arg0, %c0_i32, %c0_i32_0 : i32, i32, i32
  }
}

</mosaic_0001>

<llo_original>
// kernel: tpu_custom_call.1
$region0: #{tpu_custom_call.1}
  #allocation0 [shape = 'u32[]', space=smem, size = 0x4, offset = 0x4, fixed_abs, tag = 'smem constant byte address 0x4 - core index']
  #allocation1 [shape = 'u32[72,128]{1,0:T(1,128)}', space=vmem, size = 0x9000, scoped, tag = 'internal scratch']
  %s0 = inlined_call_operand.vmem [shape: f32[2,8,128], index: 0, kind: input, shape index: {}]
  %s1 = inlined_call_operand.hbm [shape: f32[3,8,8], index: 1, kind: input, shape index: {}]
  %s2 = inlined_call_operand.vmem [shape: f32[1,8,1], index: 2, kind: input, shape index: {}]
  %s3 = inlined_call_operand.hbm [shape: f32[3,8,8], index: 3, kind: input, shape index: {}]
  %s4 = inlined_call_operand.vmem [shape: f32[1,8,1], index: 4, kind: input, shape index: {}]
  %s5 = inlined_call_operand.hbm [shape: f32[2,8,128], index: 5, kind: output, shape index: {0}]
  %s6 = inlined_call_operand.hbm [shape: f32[2,8,128], index: 6, kind: output, shape index: {1}]
  %7 = xla_tuple %s5, %s6
  %s8 = sld [smem:[#allocation0]]
  $region69: #{tpu_custom_call.1} parent=0
    _
  %s10 = ssub.s32 1, %s8
  %s11 = scalar_select 0, %s10, %s8
  $region1: #{tpu_custom_call.1} parent=0
    #allocation2 [shape = 'u8[12288]{0}', space=vmem, size = 0x3000, scoped, tag = 'input window, operand 1, single buffered']
    #allocation3 [shape = 's32[2]{0}', space=sflag, size = 0x8, scoped, tag = 'scoped memory for tpu_custom_call.1']
    #allocation4 [shape = 's32[2]{0}', space=sflag, size = 0x8, scoped, tag = 'scoped memory for tpu_custom_call.1']
    #allocation5 [shape = 'u8[12288]{0}', space=vmem, size = 0x3000, scoped, tag = 'input window, operand 3, single buffered']
    #allocation6 [shape = 's32[1]{0}', space=sflag, size = 0x4, scoped, tag = 'scoped memory for tpu_custom_call.1']
    #allocation7 [shape = 'u8[8192]{0}', space=vmem, size = 0x2000, scoped, tag = 'output window, operand 0']
    #allocation8 [shape = 'u8[8192]{0}', space=vmem, size = 0x2000, scoped, tag = 'output window, operand 1']
    #allocation9 [shape = 's32[2]{0}', space=sflag, size = 0x8, scoped, tag = 'scoped memory for tpu_custom_call.1']
    %12 = vsyncpa [#allocation3], 0
    %13 = vsyncpa [#allocation6], 0
    %14 = vsyncpa [#allocation4], 0
    %s15 = scalar_lea.sflag [#allocation4], 1
    %16 = vsyncpa %s15, 0
    %17 = vsyncpa [#allocation9], 0
    %s18 = scalar_lea.sflag [#allocation9], 1
    %19 = vsyncpa %s18, 0
    loop: start=0, step=1, limit=4
    $region2: #{tpu_custom_call.1} parent=1 // loop_pre_header
      _
    $region3: #{tpu_custom_call.1} parent=1 // loop_header
      %s21 = sphi 0, %s25
      %p22 = scmp.ge.s32.totalorder %s21, 4
      %s31 = sphi 0, %s33
      %s34 = sphi 0, %s31
      %s35 = sphi 0, %s34
      %s51 = sphi 0, %s35
      %s55 = sphi 0, %s55
      %s57 = sphi 0, %s55
      %s58 = sphi 0, %s57
      %s72 = sphi 0, %s58
      %s76 = sphi 0, %s76
      %s78 = sphi 0, %s76
      %s79 = sphi 0, %s78
      %s93 = sphi 0, %s79
      %s97 = sphi 0, %s97
      %s99 = sphi 0, %s97
      %s100 = sphi 0, %s99
      %s114 = sphi 0, %s100
      %s118 = sphi 0, %s118
      %s120 = sphi 0, %s118
      %s121 = sphi 0, %s120
      %s135 = sphi 0, %s121
      %s141 = sphi 0, %s143
      %s144 = sphi 0, %s141
      %s145 = sphi 0, %s144
      %s161 = sphi 0, %s145
      %s167 = sphi 0, %s169
      %s170 = sphi 0, %s167
      %s171 = sphi 0, %s170
      %s187 = sphi 0, %s171
    $region4: #{tpu_custom_call.1} parent=1 // loop_header_branch
      %24 = sbr.rel (%p22) target = $region8
    $region5: #{tpu_custom_call.1} parent=1 // loop_body
      %s26 = ssub.s32 %s21, 1
      %s27 = ssub.s32 %s21, 2
      %s28 = sadd.s32 %s21, 1
      %s29 = ssub.s32 %s21, %s28
      %p30 = scmp.eq.s32.totalorder %s29, 0
      %s32 = sadd.s32 %s31, 1
      %s33 = scalar_select %p30, %s31, %s32
      %p36 = pneg %p30
      %p37 = scmp.eq.s32.totalorder %s21, 1
      %p38 = por %p36, %p37
      %p39 = scmp.ne.s32.totalorder %s31, %s34
      %p40 = scmp.eq.s32.totalorder %s21, 0
      %p41 = por %p39, %p40
      %p42 = scmp.ne.s32.totalorder %s31, %s34
      %p43 = scmp.eq.s32.totalorder %s26, 1
      %p44 = por %p42, %p43
      %p45 = scmp.ne.s32.totalorder %s34, %s35
      %p46 = scmp.eq.s32.totalorder %s26, 0
      %p47 = por %p45, %p46
      %p48 = scmp.ne.s32.totalorder %s34, %s35
      %p49 = scmp.eq.s32.totalorder %s27, 1
      %p50 = por %p48, %p49
      %p52 = scmp.ne.s32.totalorder %s35, %s51
      %p53 = scmp.eq.s32.totalorder %s27, 0
      %p54 = por %p52, %p53
      %s56 = sadd.s32 %s55, 1
      %p59 = scmp.eq.s32.totalorder %s21, 1
      %p60 = scmp.ne.s32.totalorder %s55, %s57
      %p61 = scmp.eq.s32.totalorder %s21, 0
      %p62 = por %p60, %p61
      %p63 = scmp.ne.s32.totalorder %s55, %s57
      %p64 = scmp.eq.s32.totalorder %s26, 1
      %p65 = por %p63, %p64
      %p66 = scmp.ne.s32.totalorder %s57, %s58
      %p67 = scmp.eq.s32.totalorder %s26, 0
      %p68 = por %p66, %p67
      %p69 = scmp.ne.s32.totalorder %s57, %s58
      %p70 = scmp.eq.s32.totalorder %s27, 1
      %p71 = por %p69, %p70
      %p73 = scmp.ne.s32.totalorder %s58, %s72
      %p74 = scmp.eq.s32.totalorder %s27, 0
      %p75 = por %p73, %p74
      %s77 = sadd.s32 %s76, 1
      %p80 = scmp.eq.s32.totalorder %s21, 1
      %p81 = scmp.ne.s32.totalorder %s76, %s78
      %p82 = scmp.eq.s32.totalorder %s21, 0
      %p83 = por %p81, %p82
      %p84 = scmp.ne.s32.totalorder %s76, %s78
      %p85 = scmp.eq.s32.totalorder %s26, 1
      %p86 = por %p84, %p85
      %p87 = scmp.ne.s32.totalorder %s78, %s79
      %p88 = scmp.eq.s32.totalorder %s26, 0
      %p89 = por %p87, %p88
      %p90 = scmp.ne.s32.totalorder %s78, %s79
      %p91 = scmp.eq.s32.totalorder %s27, 1
      %p92 = por %p90, %p91
      %p94 = scmp.ne.s32.totalorder %s79, %s93
      %p95 = scmp.eq.s32.totalorder %s27, 0
      %p96 = por %p94, %p95
      %s98 = sadd.s32 %s97, 1
      %p101 = scmp.eq.s32.totalorder %s21, 1
      %p102 = scmp.ne.s32.totalorder %s97, %s99
      %p103 = scmp.eq.s32.totalorder %s21, 0
      %p104 = por %p102, %p103
      %p105 = scmp.ne.s32.totalorder %s97, %s99
      %p106 = scmp.eq.s32.totalorder %s26, 1
      %p107 = por %p105, %p106
      %p108 = scmp.ne.s32.totalorder %s99, %s100
      %p109 = scmp.eq.s32.totalorder %s26, 0
      %p110 = por %p108, %p109
      %p111 = scmp.ne.s32.totalorder %s99, %s100
      %p112 = scmp.eq.s32.totalorder %s27, 1
      %p113 = por %p111, %p112
      %p115 = scmp.ne.s32.totalorder %s100, %s114
      %p116 = scmp.eq.s32.totalorder %s27, 0
      %p117 = por %p115, %p116
      %s119 = sadd.s32 %s118, 1
      %p122 = scmp.eq.s32.totalorder %s21, 1
      %p123 = scmp.ne.s32.totalorder %s118, %s120
      %p124 = scmp.eq.s32.totalorder %s21, 0
      %p125 = por %p123, %p124
      %p126 = scmp.ne.s32.totalorder %s118, %s120
      %p127 = scmp.eq.s32.totalorder %s26, 1
      %p128 = por %p126, %p127
      %p129 = scmp.ne.s32.totalorder %s120, %s121
      %p130 = scmp.eq.s32.totalorder %s26, 0
      %p131 = por %p129, %p130
      %p132 = scmp.ne.s32.totalorder %s120, %s121
      %p133 = scmp.eq.s32.totalorder %s27, 1
      %p134 = por %p132, %p133
      %p136 = scmp.ne.s32.totalorder %s121, %s135
      %p137 = scmp.eq.s32.totalorder %s27, 0
      %p138 = por %p136, %p137
      %s139 = ssub.s32 %s21, %s28
      %p140 = scmp.eq.s32.totalorder %s139, 0
      %s142 = sadd.s32 %s141, 1
      %s143 = scalar_select %p140, %s141, %s142
      %p146 = pneg %p140
      %p147 = scmp.eq.s32.totalorder %s21, 1
      %p148 = por %p146, %p147
      %p149 = scmp.ne.s32.totalorder %s141, %s144
      %p150 = scmp.eq.s32.totalorder %s21, 0
      %p151 = por %p149, %p150
      %p152 = scmp.ne.s32.totalorder %s141, %s144
      %p153 = scmp.eq.s32.totalorder %s26, 1
      %p154 = por %p152, %p153
      %p155 = scmp.ne.s32.totalorder %s144, %s145
      %p156 = scmp.eq.s32.totalorder %s26, 0
      %p157 = por %p155, %p156
      %p158 = scmp.ne.s32.totalorder %s144, %s145
      %p159 = scmp.eq.s32.totalorder %s27, 1
      %p160 = por %p158, %p159
      %p162 = scmp.ne.s32.totalorder %s145, %s161
      %p163 = scmp.eq.s32.totalorder %s27, 0
      %p164 = por %p162, %p163
      %s165 = ssub.s32 %s21, %s28
      %p166 = scmp.eq.s32.totalorder %s165, 0
      %s168 = sadd.s32 %s167, 1
      %s169 = scalar_select %p166, %s167, %s168
      %p172 = pneg %p166
      %p173 = scmp.eq.s32.totalorder %s21, 1
      %p174 = por %p172, %p173
      %p175 = scmp.ne.s32.totalorder %s167, %s170
      %p176 = scmp.eq.s32.totalorder %s21, 0
      %p177 = por %p175, %p176
      %p178 = scmp.ne.s32.totalorder %s167, %s170
      %p179 = scmp.eq.s32.totalorder %s26, 1
      %p180 = por %p178, %p179
      %p181 = scmp.ne.s32.totalorder %s170, %s171
      %p182 = scmp.eq.s32.totalorder %s26, 0
      %p183 = por %p181, %p182
      %p184 = scmp.ne.s32.totalorder %s170, %s171
      %p185 = scmp.eq.s32.totalorder %s27, 1
      %p186 = por %p184, %p185
      %p188 = scmp.ne.s32.totalorder %s171, %s187
      %p189 = scmp.eq.s32.totalorder %s27, 0
      %p190 = por %p188, %p189
      %p191 = scmp.le.s32.totalorder 1, %s21
      %p192 = scmp.lt.s32.totalorder %s21, 3
      %p193 = pnand %p191, %p192
      %p194 = pneg %p193
      // Predicated region
      $region9: #{tpu_custom_call.1} parent=5 // pred_check
        _
      $region10: #{tpu_custom_call.1} parent=5 // pred_check_branch
        %196 = sbr.rel (%p193) target = $region12
      $region11: #{tpu_custom_call.1} parent=5 // pred_region
        %s197 = ssub.s32 %s21, 1
        // Predicated region
        $region13: #{tpu_custom_call.1} parent=11 // pred_check
          %p198 = pneg %p68
        $region14: #{tpu_custom_call.1} parent=11 // pred_check_branch
          %200 = sbr.rel (%p198) target = $region16
        $region15: #{tpu_custom_call.1} parent=11 // pred_region
          %202 = vsyncadd [#allocation3], 0
          %s203 = sshll.u32 %s1, 4
          %s204 = int_to_ptr.hbm [resolvable:$true] %s203
          %s205 = sshll.u32 [#allocation2], 4
          %s206 = int_to_ptr.vmem [resolvable:$true] %s205
          %211 = dma.hbm_to_vmem [thread:$0]  %s204, 384, %s206, [#allocation3], 128, 128, 8
        $region16: #{tpu_custom_call.1} parent=11 // pred_fallthru
          _
        // Predicated region
        $region17: #{tpu_custom_call.1} parent=11 // pred_check
          %p212 = pneg %p89
        $region18: #{tpu_custom_call.1} parent=11 // pred_check_branch
          %214 = sbr.rel (%p212) target = $region20
        $region19: #{tpu_custom_call.1} parent=11 // pred_region
          _
        $region20: #{tpu_custom_call.1} parent=11 // pred_fallthru
          _
        // Predicated region
        $region21: #{tpu_custom_call.1} parent=11 // pred_check
          %p215 = pneg %p110
        $region22: #{tpu_custom_call.1} parent=11 // pred_check_branch
          %217 = sbr.rel (%p215) target = $region24
        $region23: #{tpu_custom_call.1} parent=11 // pred_region
          %219 = vsyncadd [#allocation6], 0
          %s220 = sshll.u32 %s3, 4
          %s221 = int_to_ptr.hbm [resolvable:$true] %s220
          %s222 = sshll.u32 [#allocation5], 4
          %s223 = int_to_ptr.vmem [resolvable:$true] %s222
          %228 = dma.hbm_to_vmem [thread:$0]  %s221, 384, %s223, [#allocation6], 128, 128, 8
        $region24: #{tpu_custom_call.1} parent=11 // pred_fallthru
          _
        // Predicated region
        $region25: #{tpu_custom_call.1} parent=11 // pred_check
          %p229 = pneg %p131
        $region26: #{tpu_custom_call.1} parent=11 // pred_check_branch
          %231 = sbr.rel (%p229) target = $region28
        $region27: #{tpu_custom_call.1} parent=11 // pred_region
          _
        $region28: #{tpu_custom_call.1} parent=11 // pred_fallthru
          _
      $region12: #{tpu_custom_call.1} parent=5 // pred_fallthru
        _
      %p232 = scmp.lt.s32.totalorder %s21, 2
      // Predicated region
      $region29: #{tpu_custom_call.1} parent=5 // pred_check
        %p233 = pneg %p232
      $region30: #{tpu_custom_call.1} parent=5 // pred_check_branch
        %235 = sbr.rel (%p233) target = $region32
      $region31: #{tpu_custom_call.1} parent=5 // pred_region
        // Predicated region
        $region33: #{tpu_custom_call.1} parent=31 // pred_check
          %p236 = pneg %p41
        $region34: #{tpu_custom_call.1} parent=31 // pred_check_branch
          %238 = sbr.rel (%p236) target = $region36
        $region35: #{tpu_custom_call.1} parent=31 // pred_region
          %p239 = scmp.lt.s32.totalorder %s21, 1
          %s240 = scalar_select %p239, %s21, 1
          %s241 = smul.addr %s240, 8
          %s242 = scalar_lea.vmem %s0, %s241
        $region36: #{tpu_custom_call.1} parent=31 // pred_fallthru
          _
      $region32: #{tpu_custom_call.1} parent=5 // pred_fallthru
        _
      %p243 = scmp.le.s32.totalorder 1, %s21
      %p244 = scmp.lt.s32.totalorder %s21, 3
      %p245 = pnand %p243, %p244
      %p246 = pneg %p245
      // Predicated region
      $region37: #{tpu_custom_call.1} parent=5 // pred_check
        _
      $region38: #{tpu_custom_call.1} parent=5 // pred_check_branch
        %248 = sbr.rel (%p245) target = $region40
      $region39: #{tpu_custom_call.1} parent=5 // pred_region
        %s249 = ssub.s32 %s21, 1
        // Predicated region
        $region41: #{tpu_custom_call.1} parent=39 // pred_check
          %p250 = pneg %p68
        $region42: #{tpu_custom_call.1} parent=39 // pred_check_branch
          %252 = sbr.rel (%p250) target = $region44
        $region43: #{tpu_custom_call.1} parent=39 // pred_region
          %254 = dma.done [#allocation3], 384
        $region44: #{tpu_custom_call.1} parent=39 // pred_fallthru
          _
        // Predicated region
        $region45: #{tpu_custom_call.1} parent=39 // pred_check
          %p255 = pneg %p110
        $region46: #{tpu_custom_call.1} parent=39 // pred_check_branch
          %257 = sbr.rel (%p255) target = $region48
        $region47: #{tpu_custom_call.1} parent=39 // pred_region
          %259 = dma.done [#allocation6], 384
        $region48: #{tpu_custom_call.1} parent=39 // pred_fallthru
          _
        %p260 = scmp.lt.s32.totalorder %s26, 1
        %s261 = scalar_select %p260, %s26, 1
        %s262 = smul.addr %s261, 8
        %s263 = scalar_lea.vmem %s0, %s262
        %p264 = pneg %p47
        %p265 = pneg %p44
        %p266 = pneg %p68
        %p267 = pneg %p65
        %p268 = pneg %p89
        %p269 = pneg %p86
        %p270 = pneg %p110
        %p271 = pneg %p107
        %p272 = pneg %p131
        %p273 = pneg %p128
        %p274 = pneg %p157
        %p275 = pneg %p154
        %s276 = sand.u32 %s144, 1
        %s277 = scalar_lea.sflag [#allocation4], %s276
        %s278 = sand.u32 %s144, 1
        %s279 = smul.addr %s278, 8
        %s280 = scalar_lea.vmem [#allocation7], %s279
        %p281 = pneg %p183
        %p282 = pneg %p180
        %s283 = sand.u32 %s170, 1
        %s284 = scalar_lea.sflag [#allocation9], %s283
        %s285 = sand.u32 %s170, 1
        %s286 = smul.addr %s285, 8
        %s287 = scalar_lea.vmem [#allocation8], %s286
        %p288 = scmp.lt.s32.totalorder %s26, 1
        %s289 = scalar_select %p288, %s26, 1
        %s290 = smul.addr %s289, 8
        %s291 = scalar_lea.vmem %s0, %s290
        %v292 = vlaneseq
        %v293 = vand.u32 %v292, 127
        %vm294 = vcmp.lt.s32.totalorder %v293, 0
        %v295 = vsub.s32 0, %v293
        %v296 = vsel %vm294, %v295, %v293
        %v297 = vshrl.u32 %v296, 6
        %v298 = vand.u32 %v296, 63
        %v299 = vsub.s32 0, %v298
        %v300 = vsel %vm294, %v299, %v298
        %vm301 = vcmp.ne.s32.totalorder %v300, 0
        %vm302 = vcmp.lt.s32.totalorder %v300, 0
        %vm303 = vmand %vm302, %vm301
        %v304 = vadd.s32 %v300, 64
        %v305 = vsel %vm303, %v304, %v300
        %vm306 = vcmp.ge.s32.totalorder %v305, 1
        %v307 = vsel %vm306, 1, 0
        %v308 = vcvt.s32.f32 %v307
        %vm309 = vcmp.lt.s32.totalorder %v305, 63
        %v310 = vsel %vm309, 1, 0
        %v311 = vcvt.s32.f32 %v310
        %v312 = vld [vmem:[%s291] sm:$0xff]
        %v313 = vld [vmem:[#allocation2] sm:$0xff]
        %314 = vrot.lane.b32.xlu0 %v312, 1
        %v315 = vpop.permute.xlu0 %314
        %v316 = vmul.f32 %v315, %v308
        %s317 = scalar_lea.vmem [#allocation2], 8
        %v318 = vld [vmem:[%s317] sm:$0xff]
        %vm319 = vcmask 64512
        %v321 = vsel %vm319, %v318, 0
        %323 = vmatpush.msra.mxu0 0.0
        %324 = vmatpush.msra.mxu0 0.0
        %325 = vmatpush.msra.mxu0 0.0
        %326 = vmatpush.msra.mxu0 0.0
        %327 = vmatpush.msra.mxu0 0.0
        %328 = vmatpush.msra.mxu0 0.0
        %329 = vmatpush.msra.mxu0 0.0
        %330 = vmatpush.msra.mxu0 0.0
        %331 = vmatpush.msra.mxu0 0.0
        %332 = vmatpush.msra.mxu0 0.0
        %333 = vmatpush.msra.mxu0 0.0
        %334 = vmatpush.msra.mxu0 0.0
        %335 = vmatpush.msra.mxu0 0.0
        %336 = vmatpush.msra.mxu0 0.0
        %337 = vmatpush.msra.mxu0 0.0
        %338 = vmatpush.msra.mxu0 %v312
        %339 = vmatmul.f32.gmra.mxu0 %v321
        %v340 = vpop.f32.mrf.mxu0
        %v341 = vadd.f32 0.0, %v340
        %342 = vdwg.mxu0
        %v344 = vsel %vm319, %v313, 0
        %346 = vmatpush.msra.mxu0 0.0
        %347 = vmatpush.msra.mxu0 0.0
        %348 = vmatpush.msra.mxu0 0.0
        %349 = vmatpush.msra.mxu0 0.0
        %350 = vmatpush.msra.mxu0 0.0
        %351 = vmatpush.msra.mxu0 0.0
        %352 = vmatpush.msra.mxu0 0.0
        %353 = vmatpush.msra.mxu0 0.0
        %354 = vmatpush.msra.mxu0 0.0
        %355 = vmatpush.msra.mxu0 0.0
        %356 = vmatpush.msra.mxu0 0.0
        %357 = vmatpush.msra.mxu0 0.0
        %358 = vmatpush.msra.mxu0 0.0
        %359 = vmatpush.msra.mxu0 0.0
        %360 = vmatpush.msra.mxu0 0.0
        %361 = vmatpush.msra.mxu0 %v316
        %362 = vmatmul.f32.gmra.mxu0 %v344
        %v363 = vpop.f32.mrf.mxu0
        %v364 = vadd.f32 %v341, %v363
        %365 = vdwg.mxu0
        %s366 = scalar_lea.vmem [#allocation2], 16
        %v367 = vld [vmem:[%s366] sm:$0xff]
        %368 = vrot.lane.b32.xlu0 %v312, 127
        %v369 = vpop.permute.xlu0 %368
        %v370 = vmul.f32 %v369, %v311
        %v372 = vsel %vm319, %v367, 0
        %374 = vmatpush.msra.mxu0 0.0
        %375 = vmatpush.msra.mxu0 0.0
        %376 = vmatpush.msra.mxu0 0.0
        %377 = vmatpush.msra.mxu0 0.0
        %378 = vmatpush.msra.mxu0 0.0
        %379 = vmatpush.msra.mxu0 0.0
        %380 = vmatpush.msra.mxu0 0.0
        %381 = vmatpush.msra.mxu0 0.0
        %382 = vmatpush.msra.mxu0 0.0
        %383 = vmatpush.msra.mxu0 0.0
        %384 = vmatpush.msra.mxu0 0.0
        %385 = vmatpush.msra.mxu0 0.0
        %386 = vmatpush.msra.mxu0 0.0
        %387 = vmatpush.msra.mxu0 0.0
        %388 = vmatpush.msra.mxu0 0.0
        %389 = vmatpush.msra.mxu0 %v370
        %390 = vmatmul.f32.gmra.mxu0 %v372
        %v391 = vpop.f32.mrf.mxu0
        %v392 = vadd.f32 0.0, %v391
        %393 = vdwg.mxu0
        %v394 = vadd.f32 %v364, %v392
        %v395 = vld [vmem:[%s2] sm:$0xff]
        %397 = vset.pattern.permute.xlu0 0
        %398 = vperm.xlu0 %397, %v395
        %v399 = vpop.permute.xlu0 %398
        %v401 = vadd.f32 %v394, %v399
        %v402 = vtanh.pop %v401
        %v403 = vxor.u32 %v401, 2147483648
        %v404 = vmul.f32 %v403, 1.442695
        %v405 = vpow.pop %v404
        %v406 = vadd.f32 %v405, 1.0
        %v407 = vrcp.pop %v406
        %v408 = vmul.f32 %v406, %v407
        %v409 = vsub.f32 1.0, %v408
        %v410 = vmul.f32 %v407, %v409
        %v411 = vadd.f32 %v407, %v410
        %vm412 = vweird.f32 %v406
        %vm413 = vweird.f32 %v407
        %vm414 = vmor %vm412, %vm413
        %v415 = vsel %vm414, %v407, %v411
        %v416 = vand.u32 2147483647, %v406
        %vm417 = vcmp.eq.f32.partialorder %v416, 8.507059e+37
        %v418 = vand.u32 %v406, 2147483648
        %v419 = vor.u32 1.1754944e-38, %v418
        %v420 = vsel %vm417, %v419, %v415
        %v421 = vmul.f32 1.0, %v420
        %v422 = vmul.f32 %v402, %v421
        %v423 = vld [vmem:[#allocation5] sm:$0xff]
        %424 = vrot.lane.b32.xlu0 %v422, 1
        %v425 = vpop.permute.xlu0 %424
        %v426 = vmul.f32 %v425, %v308
        %s427 = scalar_lea.vmem [#allocation5], 8
        %v428 = vld [vmem:[%s427] sm:$0xff]
        %v430 = vsel %vm319, %v428, 0
        %432 = vmatpush.msra.mxu0 0.0
        %433 = vmatpush.msra.mxu0 0.0
        %434 = vmatpush.msra.mxu0 0.0
        %435 = vmatpush.msra.mxu0 0.0
        %436 = vmatpush.msra.mxu0 0.0
        %437 = vmatpush.msra.mxu0 0.0
        %438 = vmatpush.msra.mxu0 0.0
        %439 = vmatpush.msra.mxu0 0.0
        %440 = vmatpush.msra.mxu0 0.0
        %441 = vmatpush.msra.mxu0 0.0
        %442 = vmatpush.msra.mxu0 0.0
        %443 = vmatpush.msra.mxu0 0.0
        %444 = vmatpush.msra.mxu0 0.0
        %445 = vmatpush.msra.mxu0 0.0
        %446 = vmatpush.msra.mxu0 0.0
        %447 = vmatpush.msra.mxu0 %v422
        %448 = vmatmul.f32.gmra.mxu0 %v430
        %v449 = vpop.f32.mrf.mxu0
        %v450 = vadd.f32 0.0, %v449
        %451 = vdwg.mxu0
        %v453 = vsel %vm319, %v423, 0
        %455 = vmatpush.msra.mxu0 0.0
        %456 = vmatpush.msra.mxu0 0.0
        %457 = vmatpush.msra.mxu0 0.0
        %458 = vmatpush.msra.mxu0 0.0
        %459 = vmatpush.msra.mxu0 0.0
        %460 = vmatpush.msra.mxu0 0.0
        %461 = vmatpush.msra.mxu0 0.0
        %462 = vmatpush.msra.mxu0 0.0
        %463 = vmatpush.msra.mxu0 0.0
        %464 = vmatpush.msra.mxu0 0.0
        %465 = vmatpush.msra.mxu0 0.0
        %466 = vmatpush.msra.mxu0 0.0
        %467 = vmatpush.msra.mxu0 0.0
        %468 = vmatpush.msra.mxu0 0.0
        %469 = vmatpush.msra.mxu0 0.0
        %470 = vmatpush.msra.mxu0 %v426
        %471 = vmatmul.f32.gmra.mxu0 %v453
        %v472 = vpop.f32.mrf.mxu0
        %v473 = vadd.f32 %v450, %v472
        %474 = vdwg.mxu0
        %s475 = scalar_lea.vmem [#allocation5], 16
        %v476 = vld [vmem:[%s475] sm:$0xff]
        %477 = vrot.lane.b32.xlu0 %v422, 127
        %v478 = vpop.permute.xlu0 %477
        %v479 = vmul.f32 %v478, %v311
        %v481 = vsel %vm319, %v476, 0
        %483 = vmatpush.msra.mxu0 0.0
        %484 = vmatpush.msra.mxu0 0.0
        %485 = vmatpush.msra.mxu0 0.0
        %486 = vmatpush.msra.mxu0 0.0
        %487 = vmatpush.msra.mxu0 0.0
        %488 = vmatpush.msra.mxu0 0.0
        %489 = vmatpush.msra.mxu0 0.0
        %490 = vmatpush.msra.mxu0 0.0
        %491 = vmatpush.msra.mxu0 0.0
        %492 = vmatpush.msra.mxu0 0.0
        %493 = vmatpush.msra.mxu0 0.0
        %494 = vmatpush.msra.mxu0 0.0
        %495 = vmatpush.msra.mxu0 0.0
        %496 = vmatpush.msra.mxu0 0.0
        %497 = vmatpush.msra.mxu0 0.0
        %498 = vmatpush.msra.mxu0 %v479
        %499 = vmatmul.f32.gmra.mxu0 %v481
        %v500 = vpop.f32.mrf.mxu0
        %v501 = vadd.f32 0.0, %v500
        %502 = vdwg.mxu0
        %v503 = vadd.f32 %v473, %v501
        %v504 = vld [vmem:[%s4] sm:$0xff]
        %506 = vset.pattern.permute.xlu0 0
        %507 = vperm.xlu0 %506, %v504
        %v508 = vpop.permute.xlu0 %507
        %v510 = vadd.f32 %v503, %v508
        %v511 = vtanh.pop %v510
        %v512 = vadd.f32 %v511, 0.0
        %v513 = vadd.f32 %v511, %v312
        %514 = vst [vmem:[%s280] sm:$0xff] %v512
        %515 = vst [vmem:[%s287] sm:$0xff] %v513
        %s516 = sand.u32 %s144, 1
        %s517 = scalar_lea.sflag [#allocation4], %s516
        %s518 = sand.u32 %s144, 1
        %s519 = smul.addr %s518, 8
        %s520 = scalar_lea.vmem [#allocation7], %s519
        %s521 = sand.u32 %s170, 1
        %s522 = scalar_lea.sflag [#allocation9], %s521
        %s523 = sand.u32 %s170, 1
        %s524 = smul.addr %s523, 8
        %s525 = scalar_lea.vmem [#allocation8], %s524
        // Predicated region
        $region49: #{tpu_custom_call.1} parent=39 // pred_check
          %p526 = pneg %p154
        $region50: #{tpu_custom_call.1} parent=39 // pred_check_branch
          %528 = sbr.rel (%p526) target = $region52
        $region51: #{tpu_custom_call.1} parent=39 // pred_region
          %530 = vsyncadd %s517, 0
          %s531 = smul.addr %s26, 8
          %s532 = scalar_lea.hbm %s5, %s531
          %s534 = sshll.u32 %s520, 4
          %s535 = int_to_ptr.vmem [resolvable:$true] %s534
          %s536 = sshll.u32 %s532, 4
          %s537 = int_to_ptr.hbm [resolvable:$true] %s536
          %539 = dma.vmem_to_hbm [thread:$0]  %s535, 128, %s537, %s517
        $region52: #{tpu_custom_call.1} parent=39 // pred_fallthru
          _
        // Predicated region
        $region53: #{tpu_custom_call.1} parent=39 // pred_check
          %p540 = pneg %p180
        $region54: #{tpu_custom_call.1} parent=39 // pred_check_branch
          %542 = sbr.rel (%p540) target = $region56
        $region55: #{tpu_custom_call.1} parent=39 // pred_region
          %544 = vsyncadd %s522, 0
          %s545 = smul.addr %s26, 8
          %s546 = scalar_lea.hbm %s6, %s545
          %s548 = sshll.u32 %s525, 4
          %s549 = int_to_ptr.vmem [resolvable:$true] %s548
          %s550 = sshll.u32 %s546, 4
          %s551 = int_to_ptr.hbm [resolvable:$true] %s550
          %553 = dma.vmem_to_hbm [thread:$0]  %s549, 128, %s551, %s522
        $region56: #{tpu_custom_call.1} parent=39 // pred_fallthru
          _
      $region40: #{tpu_custom_call.1} parent=5 // pred_fallthru
        _
      %p554 = scmp.le.s32.totalorder 2, %s21
      // Predicated region
      $region57: #{tpu_custom_call.1} parent=5 // pred_check
        %p555 = pneg %p554
      $region58: #{tpu_custom_call.1} parent=5 // pred_check_branch
        %557 = sbr.rel (%p555) target = $region60
      $region59: #{tpu_custom_call.1} parent=5 // pred_region
        %s558 = ssub.s32 %s21, 2
        // Predicated region
        $region61: #{tpu_custom_call.1} parent=59 // pred_check
          %p559 = pneg %p160
        $region62: #{tpu_custom_call.1} parent=59 // pred_check_branch
          %561 = sbr.rel (%p559) target = $region64
        $region63: #{tpu_custom_call.1} parent=59 // pred_region
          %s562 = sand.u32 %s145, 1
          %s563 = scalar_lea.sflag [#allocation4], %s562
          %s564 = sand.u32 %s145, 1
          %s565 = smul.addr %s564, 8
          %s566 = scalar_lea.vmem [#allocation7], %s565
          %568 = dma.done %s563, 128
        $region64: #{tpu_custom_call.1} parent=59 // pred_fallthru
          _
        // Predicated region
        $region65: #{tpu_custom_call.1} parent=59 // pred_check
          %p569 = pneg %p186
        $region66: #{tpu_custom_call.1} parent=59 // pred_check_branch
          %571 = sbr.rel (%p569) target = $region68
        $region67: #{tpu_custom_call.1} parent=59 // pred_region
          %s572 = sand.u32 %s171, 1
          %s573 = scalar_lea.sflag [#allocation9], %s572
          %s574 = sand.u32 %s171, 1
          %s575 = smul.addr %s574, 8
          %s576 = scalar_lea.vmem [#allocation8], %s575
          %578 = dma.done %s573, 128
        $region68: #{tpu_custom_call.1} parent=59 // pred_fallthru
          _
      $region60: #{tpu_custom_call.1} parent=5 // pred_fallthru
        _
    $region6: #{tpu_custom_call.1} parent=1 // loop_footer
      %s25 = sadd.s32 1, %s21
    $region7: #{tpu_custom_call.1} parent=1 // loop_footer_branch
      %20 = sbr.rel target = $region3
    $region8: #{tpu_custom_call.1} parent=1 // loop_exit
      _
    %579 = vsyncpa [#allocation3], 1
    %s580 = scalar_lea.sflag [#allocation3], 1
    %581 = vsyncpa %s580, 1
    %582 = vsyncpa [#allocation6], 1
    %583 = vsyncpa [#allocation4], 1
    %s584 = scalar_lea.sflag [#allocation4], 1
    %585 = vsyncpa %s584, 1
    %586 = vsyncpa [#allocation9], 1
    %s587 = scalar_lea.sflag [#allocation9], 1
    %588 = vsyncpa %s587, 1

</llo_original>
